<compile_context>
chip_gen: v5e
topology: v5e:2x2
jax: 0.10.0
libtpu: 0.0.40
codegen_flags: <defaults>
</compile_context>

<pallas_src>
import functools

import jax
import jax.numpy as jnp
from jax.experimental import pallas as pl
from jax.experimental.pallas import tpu as pltpu


# ----------------------------- Pallas kernels ------------------------------

def _conv_stats_kernel(p_ref, w_ref, sum_ref, sq_ref, sum_acc, sq_acc, *,
                       s_valid, ts, ragged):
    """Pass 1: conv tile (lane-dense) -> per-batch channel sum / sum-of-squares.

    p_ref:   (K, TS)    im2col patches for this tile (K = C*2*2), compute dtype
    w_ref:   (Cout, K)  conv weights, compute dtype
    sum_ref: (Cout, 1)  per-batch-element sum_s y        (written at last tile)
    sq_ref:  (Cout, 1)  per-batch-element sum_s y^2      (written at last tile)
    sum_acc / sq_acc: (Cout, 1) f32 VMEM accumulators over the spatial-tile axis.
    """
    j = pl.program_id(1)

    @pl.when(j == 0)
    def _():
        sum_acc[...] = jnp.zeros_like(sum_acc)
        sq_acc[...] = jnp.zeros_like(sq_acc)

    y = jnp.dot(w_ref[...], p_ref[...], preferred_element_type=jnp.float32)
    if ragged:
        # Last spatial tile may run past the true extent: the out-of-bounds lanes
        # contain unspecified data, so mask them before reducing.
        lane = jax.lax.broadcasted_iota(jnp.int32, y.shape, 1)
        y = jnp.where(lane + j * ts < s_valid, y, 0.0)

    sum_acc[...] += jnp.sum(y, axis=1, keepdims=True)
    sq_acc[...] += jnp.sum(y * y, axis=1, keepdims=True)

    @pl.when(j == pl.num_programs(1) - 1)
    def _():
        sum_ref[...] = sum_acc[...]
        sq_ref[...] = sq_acc[...]


def _conv_bn_relu_kernel(p_ref, w_ref, shift_ref, o_ref):
    """Pass 2: recompute the conv tile with BN-scale-folded weights, add shift, ReLU.

    p_ref:     (K, TS)    im2col patches, compute dtype
    w_ref:     (Cout, K)  (gamma * inv_std) folded into the conv weights
    shift_ref: (Cout, 1)  beta - mean * gamma * inv_std, f32
    o_ref:     (Cout, TS) f32 output (lane-dense; directly NCHW-reshapeable)
    """
    y = jnp.dot(w_ref[...], p_ref[...], preferred_element_type=jnp.float32)
    o_ref[...] = jnp.maximum(y + shift_ref[...], 0.0)


# ------------------------- VMEM budgeting / tiling --------------------------

def _default_vmem_budgets():
    """(vmem_limit_bytes, per-step tile budget), sized to the chip generation."""
    try:
        info = pltpu.get_tpu_info()
        phys = int(getattr(info, "vmem_capacity_bytes", 0) or 0)
    except Exception:  # query unavailable -> be conservative
        phys = 0
    if phys <= 0:
        phys = 64 * 2**20                      # assume v7x-sized VMEM (64 MiB/TC)
    if phys >= 128 * 2**20:                    # v5e / v6e: 128 MiB physical
        return 100 * 2**20, 28 * 2**20
    return 48 * 2**20, 12 * 2**20              # v7x: 64 MiB physical per TC


def _pick_spatial_tile(s_total, k, cout, in_bytes, budget_bytes, batch,
                       min_grid_steps=4):
    """Largest lane-axis tile that fits the per-step VMEM budget.

    Accounts for the double-buffered patch block, the double-buffered output
    block, the in-kernel f32 y temporary and the (small) weight/shift blocks.
    Returned tile is either the full axis or a multiple of 128.
    """
    const = 2 * cout * (k + 1) * 4             # weights + shift blocks

    def step_bytes(ts):
        return (2 * k * ts * in_bytes          # patch block (double-buffered)
                + 2 * cout * ts * 4            # output block (double-buffered)
                + cout * ts * 4                # in-kernel f32 y temporary
                + const)

    if step_bytes(s_total) <= budget_bytes:
        ts = s_total
    else:
        per_col = 2 * k * in_bytes + 3 * cout * 4
        ts = max(128, (budget_bytes - const) // per_col // 128 * 128)
        ts = min(ts, s_total)

    # Make sure the grid has a few steps so the pipeline has something to overlap
    # and v7x's second TensorCore gets work even when the batch is tiny.
    n_s = -(-s_total // ts)
    if batch * n_s < min_grid_steps and s_total > 128:
        want_ns = -(-min_grid_steps // batch)
        ts_cap = max(128, (-(-s_total // want_ns)) // 128 * 128)
        ts = min(ts, ts_cap)
    return ts


# ------------------------------ host wrapper -------------------------------

def preconv_forward(x, weight, gamma, beta, *, eps=1e-5,
                    compute_dtype=jnp.bfloat16,
                    vmem_tile_budget_bytes=None,
                    vmem_limit_bytes=None):
    """x: [N, C, H, W] float32 (NCHW). weight: [Cout, C, 2, 2]. Returns NCHW f32."""
    N, C, H, W = x.shape
    Cout = weight.shape[0]
    Ho, Wo = H // 2, W // 2
    if H != 2 * Ho or W != 2 * Wo:       # odd sizes: stride-2/VALID drops last row/col
        x = x[:, :, : 2 * Ho, : 2 * Wo]
    S = Ho * Wo
    K = C * 4

    if vmem_limit_bytes is None or vmem_tile_budget_bytes is None:
        lim, budget = _default_vmem_budgets()
        if vmem_limit_bytes is None:
            vmem_limit_bytes = lim
        if vmem_tile_budget_bytes is None:
            vmem_tile_budget_bytes = budget

    # Lane-dense im2col patches pT[n, k, s], k ordered (c, kh, kw), s = ho*Wo + wo.
    # Emitted directly in the (narrow) compute dtype so the materialized array and
    # both kernel passes read half the bytes when compute_dtype=bf16.
    # TODO(synk): fold this repack into the kernels (in-kernel 4-tap conv on raw
    # NCHW row blocks) to remove this x-sized HBM round trip completely.
    pT = (x.astype(compute_dtype)
           .reshape(N, C, Ho, 2, Wo, 2)
           .transpose(0, 1, 3, 5, 2, 4)
           .reshape(N, K, S))
    w2d = weight.reshape(Cout, K).astype(jnp.float32)
    w1 = w2d.astype(compute_dtype)

    in_bytes = jnp.dtype(compute_dtype).itemsize
    TS = _pick_spatial_tile(S, K, Cout, in_bytes, vmem_tile_budget_bytes, N)
    n_s = -(-S // TS)                    # pl.cdiv; ragged last tile handled in-kernel
    grid = (N, n_s)
    ragged = (S % TS) != 0

    p_spec = pl.BlockSpec((None, K, TS), lambda n, j: (n, 0, j))
    w_spec = pl.BlockSpec((Cout, K), lambda n, j: (0, 0))

    # ---- Pass 1: per-batch channel sums / sums-of-squares (no y in HBM).
    sums, sqs = pl.pallas_call(
        functools.partial(_conv_stats_kernel, s_valid=S, ts=TS, ragged=ragged),
        out_shape=(jax.ShapeDtypeStruct((N, Cout, 1), jnp.float32),
                   jax.ShapeDtypeStruct((N, Cout, 1), jnp.float32)),
        grid=grid,
        in_specs=[p_spec, w_spec],
        out_specs=(pl.BlockSpec((None, Cout, 1), lambda n, j: (n, 0, 0)),
                   pl.BlockSpec((None, Cout, 1), lambda n, j: (n, 0, 0))),
        scratch_shapes=[pltpu.VMEM((Cout, 1), jnp.float32),
                        pltpu.VMEM((Cout, 1), jnp.float32)],
        compiler_params=pltpu.CompilerParams(
            dimension_semantics=("parallel", "arbitrary"),
            vmem_limit_bytes=vmem_limit_bytes),
    )(pT, w1)

    # Fold BN (training-mode, biased variance like PyTorch) into weights/shift.
    # NOTE: var = E[y^2] - E[y]^2 in f32 can lose precision for strongly
    # non-centered y; acceptable for a stem conv. TODO(synk): Welford merge.
    count = jnp.float32(N * S)
    ch_sum = jnp.sum(sums[:, :, 0], axis=0)          # (Cout,)
    ch_sq = jnp.sum(sqs[:, :, 0], axis=0)            # (Cout,)
    mean = ch_sum / count
    var = jnp.maximum(ch_sq / count - mean * mean, 0.0)
    inv_std = jax.lax.rsqrt(var + eps)
    scale = gamma.astype(jnp.float32) * inv_std                    # (Cout,)
    shift = (beta.astype(jnp.float32) - mean * scale).reshape(Cout, 1)
    w2 = (w2d * scale[:, None]).astype(compute_dtype)              # scale folded in

    # ---- Pass 2: recompute conv tile with folded weights, add shift, ReLU.
    out = pl.pallas_call(
        _conv_bn_relu_kernel,
        out_shape=jax.ShapeDtypeStruct((N, Cout, S), jnp.float32),
        grid=grid,
        in_specs=[p_spec, w_spec,
                  pl.BlockSpec((Cout, 1), lambda n, j: (0, 0))],
        out_specs=pl.BlockSpec((None, Cout, TS), lambda n, j: (n, 0, j)),
        compiler_params=pltpu.CompilerParams(
            dimension_semantics=("parallel", "parallel"),
            vmem_limit_bytes=vmem_limit_bytes),
    )(pT, w2, shift)

    # [N, Cout, Ho*Wo] is already NCHW order -> free reshape, no transpose/slice.
    return out.reshape(N, Cout, Ho, Wo)


# ------------------------------ reference ----------------------------------

def preconv_reference(x, weight, gamma, beta, eps=1e-5):
    y = jax.lax.conv_general_dilated(
        x, weight, window_strides=(2, 2), padding="VALID",
        dimension_numbers=("NCHW", "OIHW", "NCHW"))
    mean = jnp.mean(y, axis=(0, 2, 3), keepdims=True)
    var = jnp.mean((y - mean) ** 2, axis=(0, 2, 3), keepdims=True)  # biased
    yhat = (y - mean) / jnp.sqrt(var + eps)
    yhat = yhat * gamma[None, :, None, None] + beta[None, :, None, None]
    return jnp.maximum(yhat, 0.0)


# -------------------------------- main --------------------------------------

if __name__ == "__main__":
    key = jax.random.PRNGKey(0)
    k_x, k_w, k_g, k_b = jax.random.split(key, 4)

    N, C, H, W = 2, 4, 16, 16
    Cout = 8

    x = jax.random.normal(k_x, (N, C, H, W), dtype=jnp.float32)
    weight = jax.random.normal(k_w, (Cout, C, 2, 2), dtype=jnp.float32) * 0.2
    gamma = 1.0 + 0.1 * jax.random.normal(k_g, (Cout,), dtype=jnp.float32)
    beta = 0.1 * jax.random.normal(k_b, (Cout,), dtype=jnp.float32)

    ref = preconv_reference(x, weight, gamma, beta)

    # Exact-dtype path (f32 end to end): tight tolerance vs. the XLA reference.
    fwd_f32 = jax.jit(functools.partial(preconv_forward, compute_dtype=jnp.float32))
    out_f32 = jax.block_until_ready(fwd_f32(x, weight, gamma, beta))
    assert out_f32.shape == (N, Cout, H // 2, W // 2)
    assert jnp.allclose(out_f32, ref, atol=1e-4, rtol=1e-4), "f32 mismatch vs reference"

    # Default bf16-traffic path: same semantics, half the dominant HBM bytes.
    fwd_bf16 = jax.jit(preconv_forward)
    out_bf16 = jax.block_until_ready(fwd_bf16(x, weight, gamma, beta))
    assert jnp.allclose(out_bf16, ref, atol=5e-2, rtol=5e-2), "bf16 mismatch vs reference"

    # Ragged spatial tiling: force TS=128 over S=324 (3 tiles, masked last tile),
    # exercising the pad-free / slice-free boundary handling.
    N2, H2, W2 = 1, 36, 36
    x2 = jax.random.normal(k_x, (N2, C, H2, W2), dtype=jnp.float32)
    fwd_ragged = jax.jit(functools.partial(
        preconv_forward, compute_dtype=jnp.float32,
        vmem_tile_budget_bytes=40_000, vmem_limit_bytes=32 * 2**20))
    out2 = jax.block_until_ready(fwd_ragged(x2, weight, gamma, beta))
    ref2 = preconv_reference(x2, weight, gamma, beta)
    assert out2.shape == (N2, Cout, H2 // 2, W2 // 2)
    assert jnp.allclose(out2, ref2, atol=1e-4, rtol=1e-4), "ragged-tile mismatch"

    print("KERNEL_OK")
</pallas_src>

<mosaic_0001>
module attributes {stable_mosaic.version = 11 : i64} {
  func.func @_conv_stats_kernel(%arg0: i32, %arg1: i32, %arg2: memref<1x16x64xf32, #tpu.memory_space<vmem>>, %arg3: memref<8x16xf32, #tpu.memory_space<vmem>>, %arg4: memref<1x8x1xf32, #tpu.memory_space<vmem>>, %arg5: memref<1x8x1xf32, #tpu.memory_space<vmem>>, %arg6: memref<8x1xf32, #tpu.memory_space<vmem>>, %arg7: memref<8x1xf32, #tpu.memory_space<vmem>>) attributes {dimension_semantics = [#tpu.dimension_semantics<parallel>, #tpu.dimension_semantics<arbitrary>], iteration_bounds = array<i64: 2, 1>, scalar_prefetch = 0 : i64, scratch_operands = 2 : i64, tpu.core_type = #tpu.core_type<tc>, window_params = [{transform_indices = @transform_0, window_bounds = array<i64: 1, 16, 64>}, {pipeline_mode = #tpu.pipeline_mode<synchronous>, transform_indices = @transform_1, window_bounds = array<i64: 8, 16>}, {transform_indices = @transform_2, window_bounds = array<i64: 1, 8, 1>}, {transform_indices = @transform_3, window_bounds = array<i64: 1, 8, 1>}]} {
    %c0_i32 = arith.constant 0 : i32
    %0 = arith.cmpi eq, %arg1, %c0_i32 : i32
    %1 = arith.extui %0 : i1 to i32
    %c0_i32_0 = arith.constant 0 : i32
    %2 = arith.cmpi ne, %1, %c0_i32_0 : i32
    scf.if %2 {
      %cst_17 = arith.constant 0.000000e+00 : f32
      %21 = vector.broadcast %cst_17 : f32 to vector<8x1xf32>
      %c0_18 = arith.constant 0 : index
      %c0_19 = arith.constant 0 : index
      %22 = vector.load %arg6[%c0_18, %c0_19] : memref<8x1xf32, #tpu.memory_space<vmem>>, vector<8x1xf32>
      tpu.vector_store %arg6[%c0_18, %c0_19], %21 {strides = array<i32>} : memref<8x1xf32, #tpu.memory_space<vmem>>, vector<8x1xf32>,
      %cst_20 = arith.constant 0.000000e+00 : f32
      %23 = vector.broadcast %cst_20 : f32 to vector<8x1xf32>
      %c0_21 = arith.constant 0 : index
      %c0_22 = arith.constant 0 : index
      %24 = vector.load %arg7[%c0_21, %c0_22] : memref<8x1xf32, #tpu.memory_space<vmem>>, vector<8x1xf32>
      tpu.vector_store %arg7[%c0_21, %c0_22], %23 {strides = array<i32>} : memref<8x1xf32, #tpu.memory_space<vmem>>, vector<8x1xf32>,
    } else {
    }
    %c0 = arith.constant 0 : index
    %c0_1 = arith.constant 0 : index
    %3 = vector.load %arg3[%c0, %c0_1] : memref<8x16xf32, #tpu.memory_space<vmem>>, vector<8x16xf32>
    %c0_2 = arith.constant 0 : index
    %c0_3 = arith.constant 0 : index
    %c0_4 = arith.constant 0 : index
    %4 = vector.load %arg2[%c0_2, %c0_3, %c0_4] : memref<1x16x64xf32, #tpu.memory_space<vmem>>, vector<1x16x64xf32>
    %5 = vector.shape_cast %4 : vector<1x16x64xf32> to vector<16x64xf32>
    %cst = arith.constant dense<0.000000e+00> : vector<8x64xf32>
    %6 = tpu.matmul %3, %5, %cst {dimension_numbers = #tpu.dot_dimension_numbers<[1], [0], [0], [1], [0, 0, 1, 1], [], []>} : vector<8x16xf32>, vector<16x64xf32>, vector<8x64xf32> -> vector<8x64xf32>
    %c0_5 = arith.constant 0 : index
    %c0_6 = arith.constant 0 : index
    %7 = vector.load %arg6[%c0_5, %c0_6] : memref<8x1xf32, #tpu.memory_space<vmem>>, vector<8x1xf32>
    %cst_7 = arith.constant dense<0.000000e+00> : vector<8xf32>
    %8 = vector.multi_reduction <add>, %6, %cst_7 [1] : vector<8x64xf32> to vector<8xf32>
    %9 = vector.shape_cast %8 : vector<8xf32> to vector<8x1xf32>
    %10 = arith.addf %7, %9 : vector<8x1xf32>
    %c0_8 = arith.constant 0 : index
    %c0_9 = arith.constant 0 : index
    %11 = vector.load %arg6[%c0_8, %c0_9] : memref<8x1xf32, #tpu.memory_space<vmem>>, vector<8x1xf32>
    tpu.vector_store %arg6[%c0_8, %c0_9], %10 {strides = array<i32>} : memref<8x1xf32, #tpu.memory_space<vmem>>, vector<8x1xf32>,
    %c0_10 = arith.constant 0 : index
    %c0_11 = arith.constant 0 : index
    %12 = vector.load %arg7[%c0_10, %c0_11] : memref<8x1xf32, #tpu.memory_space<vmem>>, vector<8x1xf32>
    %13 = arith.mulf %6, %6 : vector<8x64xf32>
    %cst_12 = arith.constant dense<0.000000e+00> : vector<8xf32>
    %14 = vector.multi_reduction <add>, %13, %cst_12 [1] : vector<8x64xf32> to vector<8xf32>
    %15 = vector.shape_cast %14 : vector<8xf32> to vector<8x1xf32>
    %16 = arith.addf %12, %15 : vector<8x1xf32>
    %c0_13 = arith.constant 0 : index
    %c0_14 = arith.constant 0 : index
    %17 = vector.load %arg7[%c0_13, %c0_14] : memref<8x1xf32, #tpu.memory_space<vmem>>, vector<8x1xf32>
    tpu.vector_store %arg7[%c0_13, %c0_14], %16 {strides = array<i32>} : memref<8x1xf32, #tpu.memory_space<vmem>>, vector<8x1xf32>,
    %c0_i32_15 = arith.constant 0 : i32
    %18 = arith.cmpi eq, %arg1, %c0_i32_15 : i32
    %19 = arith.extui %18 : i1 to i32
    %c0_i32_16 = arith.constant 0 : i32
    %20 = arith.cmpi ne, %19, %c0_i32_16 : i32
    scf.if %20 {
      %c0_17 = arith.constant 0 : index
      %c0_18 = arith.constant 0 : index
      %21 = vector.load %arg6[%c0_17, %c0_18] : memref<8x1xf32, #tpu.memory_space<vmem>>, vector<8x1xf32>
      %c0_19 = arith.constant 0 : index
      %c0_20 = arith.constant 0 : index
      %c0_21 = arith.constant 0 : index
      %22 = vector.load %arg4[%c0_19, %c0_20, %c0_21] : memref<1x8x1xf32, #tpu.memory_space<vmem>>, vector<1x8x1xf32>
      %23 = vector.shape_cast %22 : vector<1x8x1xf32> to vector<8x1xf32>
      %24 = vector.shape_cast %21 : vector<8x1xf32> to vector<1x8x1xf32>
      tpu.vector_store %arg4[%c0_19, %c0_20, %c0_21], %24 {strides = array<i32>} : memref<1x8x1xf32, #tpu.memory_space<vmem>>, vector<1x8x1xf32>,
      %c0_22 = arith.constant 0 : index
      %c0_23 = arith.constant 0 : index
      %25 = vector.load %arg7[%c0_22, %c0_23] : memref<8x1xf32, #tpu.memory_space<vmem>>, vector<8x1xf32>
      %c0_24 = arith.constant 0 : index
      %c0_25 = arith.constant 0 : index
      %c0_26 = arith.constant 0 : index
      %26 = vector.load %arg5[%c0_24, %c0_25, %c0_26] : memref<1x8x1xf32, #tpu.memory_space<vmem>>, vector<1x8x1xf32>
      %27 = vector.shape_cast %26 : vector<1x8x1xf32> to vector<8x1xf32>
      %28 = vector.shape_cast %25 : vector<8x1xf32> to vector<1x8x1xf32>
      tpu.vector_store %arg5[%c0_24, %c0_25, %c0_26], %28 {strides = array<i32>} : memref<1x8x1xf32, #tpu.memory_space<vmem>>, vector<1x8x1xf32>,
    } else {
    }
    return
  }
  func.func @transform_0(%arg0: i32, %arg1: i32) -> (i32, i32, i32) {
    %c0_i32 = arith.constant 0 : i32
    %c0_i32_0 = arith.constant 0 : i32
    return %arg0, %c0_i32, %arg1 : i32, i32, i32
  }
  func.func @transform_1(%arg0: i32, %arg1: i32) -> (i32, i32) {
    %c0_i32 = arith.constant 0 : i32
    %c0_i32_0 = arith.constant 0 : i32
    %c0_i32_1 = arith.constant 0 : i32
    return %c0_i32, %c0_i32_0 : i32, i32
  }
  func.func @transform_2(%arg0: i32, %arg1: i32) -> (i32, i32, i32) {
    %c0_i32 = arith.constant 0 : i32
    %c0_i32_0 = arith.constant 0 : i32
    %c0_i32_1 = arith.constant 0 : i32
    return %arg0, %c0_i32, %c0_i32_0 : i32, i32, i32
  }
  func.func @transform_3(%arg0: i32, %arg1: i32) -> (i32, i32, i32) {
    %c0_i32 = arith.constant 0 : i32
    %c0_i32_0 = arith.constant 0 : i32
    %c0_i32_1 = arith.constant 0 : i32
    return %arg0, %c0_i32, %c0_i32_0 : i32, i32, i32
  }
}

module attributes {stable_mosaic.version = 11 : i64} {
  func.func @_conv_bn_relu_kernel(%arg0: i32, %arg1: i32, %arg2: memref<1x16x64xf32, #tpu.memory_space<vmem>>, %arg3: memref<8x16xf32, #tpu.memory_space<vmem>>, %arg4: memref<8x1xf32, #tpu.memory_space<vmem>>, %arg5: memref<1x8x64xf32, #tpu.memory_space<vmem>>) attributes {dimension_semantics = [#tpu.dimension_semantics<parallel>, #tpu.dimension_semantics<parallel>], iteration_bounds = array<i64: 2, 1>, scalar_prefetch = 0 : i64, scratch_operands = 0 : i64, tpu.core_type = #tpu.core_type<tc>, window_params = [{transform_indices = @transform_0, window_bounds = array<i64: 1, 16, 64>}, {pipeline_mode = #tpu.pipeline_mode<synchronous>, transform_indices = @transform_1, window_bounds = array<i64: 8, 16>}, {pipeline_mode = #tpu.pipeline_mode<synchronous>, transform_indices = @transform_2, window_bounds = array<i64: 8, 1>}, {transform_indices = @transform_3, window_bounds = array<i64: 1, 8, 64>}]} {
    %c0 = arith.constant 0 : index
    %c0_0 = arith.constant 0 : index
    %0 = vector.load %arg3[%c0, %c0_0] : memref<8x16xf32, #tpu.memory_space<vmem>>, vector<8x16xf32>
    %c0_1 = arith.constant 0 : index
    %c0_2 = arith.constant 0 : index
    %c0_3 = arith.constant 0 : index
    %1 = vector.load %arg2[%c0_1, %c0_2, %c0_3] : memref<1x16x64xf32, #tpu.memory_space<vmem>>, vector<1x16x64xf32>
    %2 = vector.shape_cast %1 : vector<1x16x64xf32> to vector<16x64xf32>
    %cst = arith.constant dense<0.000000e+00> : vector<8x64xf32>
    %3 = tpu.matmul %0, %2, %cst {dimension_numbers = #tpu.dot_dimension_numbers<[1], [0], [0], [1], [0, 0, 1, 1], [], []>} : vector<8x16xf32>, vector<16x64xf32>, vector<8x64xf32> -> vector<8x64xf32>
    %c0_4 = arith.constant 0 : index
    %c0_5 = arith.constant 0 : index
    %4 = vector.load %arg4[%c0_4, %c0_5] : memref<8x1xf32, #tpu.memory_space<vmem>>, vector<8x1xf32>
    %5 = vector.broadcast %4 : vector<8x1xf32> to vector<8x64xf32>
    %6 = arith.addf %3, %5 : vector<8x64xf32>
    %cst_6 = arith.constant 0.000000e+00 : f32
    %7 = vector.broadcast %cst_6 : f32 to vector<8x64xf32>
    %8 = arith.maximumf %6, %7 : vector<8x64xf32>
    %c0_7 = arith.constant 0 : index
    %c0_8 = arith.constant 0 : index
    %c0_9 = arith.constant 0 : index
    %9 = vector.load %arg5[%c0_7, %c0_8, %c0_9] : memref<1x8x64xf32, #tpu.memory_space<vmem>>, vector<1x8x64xf32>
    %10 = vector.shape_cast %9 : vector<1x8x64xf32> to vector<8x64xf32>
    %11 = vector.shape_cast %8 : vector<8x64xf32> to vector<1x8x64xf32>
    tpu.vector_store %arg5[%c0_7, %c0_8, %c0_9], %11 {strides = array<i32>} : memref<1x8x64xf32, #tpu.memory_space<vmem>>, vector<1x8x64xf32>,
    return
  }
  func.func @transform_0(%arg0: i32, %arg1: i32) -> (i32, i32, i32) {
    %c0_i32 = arith.constant 0 : i32
    %c0_i32_0 = arith.constant 0 : i32
    return %arg0, %c0_i32, %arg1 : i32, i32, i32
  }
  func.func @transform_1(%arg0: i32, %arg1: i32) -> (i32, i32) {
    %c0_i32 = arith.constant 0 : i32
    %c0_i32_0 = arith.constant 0 : i32
    %c0_i32_1 = arith.constant 0 : i32
    return %c0_i32, %c0_i32_0 : i32, i32
  }
  func.func @transform_2(%arg0: i32, %arg1: i32) -> (i32, i32) {
    %c0_i32 = arith.constant 0 : i32
    %c0_i32_0 = arith.constant 0 : i32
    %c0_i32_1 = arith.constant 0 : i32
    return %c0_i32, %c0_i32_0 : i32, i32
  }
  func.func @transform_3(%arg0: i32, %arg1: i32) -> (i32, i32, i32) {
    %c0_i32 = arith.constant 0 : i32
    %c0_i32_0 = arith.constant 0 : i32
    return %arg0, %c0_i32, %arg1 : i32, i32, i32
  }
}

</mosaic_0001>

<llo_original>
// kernel: preconv_forward.2
$region0: #{preconv_forward.2}
  #allocation0 [shape = 'u32[]', space=smem, size = 0x4, offset = 0x4, fixed_abs, tag = 'smem constant byte address 0x4 - core index']
  #allocation1 [shape = 'u32[72,128]{1,0:T(1,128)}', space=vmem, size = 0x9000, scoped, tag = 'internal scratch']
  #allocation2 [shape = 'f32[8,1]{1,0:T(8,128)}', space=vmem, size = 0x1000, scoped, tag = 'scratch operand']
  #allocation3 [shape = 'f32[8,1]{1,0:T(8,128)}', space=vmem, size = 0x1000, scoped, tag = 'scratch operand']
  %s0 = inlined_call_operand.vmem [shape: f32[2,16,64], index: 0, kind: input, shape index: {}]
  %s1 = inlined_call_operand.vmem [shape: f32[8,16], index: 1, kind: input, shape index: {}]
  %s2 = inlined_call_operand.vmem [shape: f32[2,8,1], index: 2, kind: output, shape index: {0}]
  %s3 = inlined_call_operand.vmem [shape: f32[2,8,1], index: 3, kind: output, shape index: {1}]
  %4 = xla_tuple %s2, %s3
  %s5 = sld [smem:[#allocation0]]
  $region57: #{preconv_forward.2} parent=0
    _
  %s7 = ssub.s32 1, %s5
  %s8 = scalar_select 0, %s7, %s5
  loop: start=0, step=1, limit=4
  $region2: #{preconv_forward.2} parent=0 // loop_pre_header
    _
  $region3: #{preconv_forward.2} parent=0 // loop_header
    %s10 = sphi 0, %s14
    %p11 = scmp.ge.s32.totalorder %s10, 4
    %s17 = sphi 0, %s29
    %s18 = sphi 0, %s25
    %s19 = sphi 0, %s17
    %s20 = sphi 0, %s18
    %s21 = sphi 0, %s19
    %s22 = sphi 0, %s20
    %s34 = sphi 0, %s36
    %s37 = sphi 0, %s34
    %s38 = sphi 0, %s37
    %s54 = sphi 0, %s38
    %s58 = sphi 0, %s58
    %s60 = sphi 0, %s58
    %s61 = sphi 0, %s60
    %s75 = sphi 0, %s61
    %s81 = sphi 0, %s83
    %s84 = sphi 0, %s81
    %s85 = sphi 0, %s84
    %s101 = sphi 0, %s85
    %s107 = sphi 0, %s109
    %s110 = sphi 0, %s107
    %s111 = sphi 0, %s110
    %s127 = sphi 0, %s111
  $region4: #{preconv_forward.2} parent=0 // loop_header_branch
    %13 = sbr.rel (%p11) target = $region8
  $region5: #{preconv_forward.2} parent=0 // loop_body
    %s15 = ssub.s32 %s10, 1
    %s16 = ssub.s32 %s10, 2
    %s23 = sadd.s32 1, %s18
    %p24 = scmp.ge.s32.totalorder %s23, 1
    %s25 = scalar_select %p24, 0, %s23
    %s26 = sadd.s32 1, %s17
    %s27 = scalar_select %p24, %s26, %s17
    %p28 = scmp.ge.s32.totalorder %s27, 2
    %s29 = scalar_select %p28, 0, %s27
    %s30 = ssub.s32 %s17, %s29
    %s31 = ssub.s32 %s18, %s25
    %s32 = sor.u32 %s30, %s31
    %p33 = scmp.eq.s32.totalorder %s32, 0
    %s35 = sadd.s32 %s34, 1
    %s36 = scalar_select %p33, %s34, %s35
    %p39 = pneg %p33
    %p40 = scmp.eq.s32.totalorder %s10, 1
    %p41 = por %p39, %p40
    %p42 = scmp.ne.s32.totalorder %s34, %s37
    %p43 = scmp.eq.s32.totalorder %s10, 0
    %p44 = por %p42, %p43
    %p45 = scmp.ne.s32.totalorder %s34, %s37
    %p46 = scmp.eq.s32.totalorder %s15, 1
    %p47 = por %p45, %p46
    %p48 = scmp.ne.s32.totalorder %s37, %s38
    %p49 = scmp.eq.s32.totalorder %s15, 0
    %p50 = por %p48, %p49
    %p51 = scmp.ne.s32.totalorder %s37, %s38
    %p52 = scmp.eq.s32.totalorder %s16, 1
    %p53 = por %p51, %p52
    %p55 = scmp.ne.s32.totalorder %s38, %s54
    %p56 = scmp.eq.s32.totalorder %s16, 0
    %p57 = por %p55, %p56
    %s59 = sadd.s32 %s58, 1
    %p62 = scmp.eq.s32.totalorder %s10, 1
    %p63 = scmp.ne.s32.totalorder %s58, %s60
    %p64 = scmp.eq.s32.totalorder %s10, 0
    %p65 = por %p63, %p64
    %p66 = scmp.ne.s32.totalorder %s58, %s60
    %p67 = scmp.eq.s32.totalorder %s15, 1
    %p68 = por %p66, %p67
    %p69 = scmp.ne.s32.totalorder %s60, %s61
    %p70 = scmp.eq.s32.totalorder %s15, 0
    %p71 = por %p69, %p70
    %p72 = scmp.ne.s32.totalorder %s60, %s61
    %p73 = scmp.eq.s32.totalorder %s16, 1
    %p74 = por %p72, %p73
    %p76 = scmp.ne.s32.totalorder %s61, %s75
    %p77 = scmp.eq.s32.totalorder %s16, 0
    %p78 = por %p76, %p77
    %s79 = ssub.s32 %s17, %s29
    %p80 = scmp.eq.s32.totalorder %s79, 0
    %s82 = sadd.s32 %s81, 1
    %s83 = scalar_select %p80, %s81, %s82
    %p86 = pneg %p80
    %p87 = scmp.eq.s32.totalorder %s10, 1
    %p88 = por %p86, %p87
    %p89 = scmp.ne.s32.totalorder %s81, %s84
    %p90 = scmp.eq.s32.totalorder %s10, 0
    %p91 = por %p89, %p90
    %p92 = scmp.ne.s32.totalorder %s81, %s84
    %p93 = scmp.eq.s32.totalorder %s15, 1
    %p94 = por %p92, %p93
    %p95 = scmp.ne.s32.totalorder %s84, %s85
    %p96 = scmp.eq.s32.totalorder %s15, 0
    %p97 = por %p95, %p96
    %p98 = scmp.ne.s32.totalorder %s84, %s85
    %p99 = scmp.eq.s32.totalorder %s16, 1
    %p100 = por %p98, %p99
    %p102 = scmp.ne.s32.totalorder %s85, %s101
    %p103 = scmp.eq.s32.totalorder %s16, 0
    %p104 = por %p102, %p103
    %s105 = ssub.s32 %s17, %s29
    %p106 = scmp.eq.s32.totalorder %s105, 0
    %s108 = sadd.s32 %s107, 1
    %s109 = scalar_select %p106, %s107, %s108
    %p112 = pneg %p106
    %p113 = scmp.eq.s32.totalorder %s10, 1
    %p114 = por %p112, %p113
    %p115 = scmp.ne.s32.totalorder %s107, %s110
    %p116 = scmp.eq.s32.totalorder %s10, 0
    %p117 = por %p115, %p116
    %p118 = scmp.ne.s32.totalorder %s107, %s110
    %p119 = scmp.eq.s32.totalorder %s15, 1
    %p120 = por %p118, %p119
    %p121 = scmp.ne.s32.totalorder %s110, %s111
    %p122 = scmp.eq.s32.totalorder %s15, 0
    %p123 = por %p121, %p122
    %p124 = scmp.ne.s32.totalorder %s110, %s111
    %p125 = scmp.eq.s32.totalorder %s16, 1
    %p126 = por %p124, %p125
    %p128 = scmp.ne.s32.totalorder %s111, %s127
    %p129 = scmp.eq.s32.totalorder %s16, 0
    %p130 = por %p128, %p129
    %p131 = scmp.le.s32.totalorder 1, %s10
    %p132 = scmp.lt.s32.totalorder %s10, 3
    %p133 = pnand %p131, %p132
    %p134 = pneg %p133
    // Predicated region
    $region9: #{preconv_forward.2} parent=5 // pred_check
      _
    $region10: #{preconv_forward.2} parent=5 // pred_check_branch
      %136 = sbr.rel (%p133) target = $region12
    $region11: #{preconv_forward.2} parent=5 // pred_region
      %s137 = ssub.s32 %s10, 1
      // Predicated region
      $region13: #{preconv_forward.2} parent=11 // pred_check
        %p138 = pneg %p71
      $region14: #{preconv_forward.2} parent=11 // pred_check_branch
        %140 = sbr.rel (%p138) target = $region16
      $region15: #{preconv_forward.2} parent=11 // pred_region
        _
      $region16: #{preconv_forward.2} parent=11 // pred_fallthru
        _
    $region12: #{preconv_forward.2} parent=5 // pred_fallthru
      _
    %p141 = scmp.lt.s32.totalorder %s10, 2
    // Predicated region
    $region17: #{preconv_forward.2} parent=5 // pred_check
      %p142 = pneg %p141
    $region18: #{preconv_forward.2} parent=5 // pred_check_branch
      %144 = sbr.rel (%p142) target = $region20
    $region19: #{preconv_forward.2} parent=5 // pred_region
      // Predicated region
      $region21: #{preconv_forward.2} parent=19 // pred_check
        %p145 = pneg %p44
      $region22: #{preconv_forward.2} parent=19 // pred_check_branch
        %147 = sbr.rel (%p145) target = $region24
      $region23: #{preconv_forward.2} parent=19 // pred_region
        %p148 = scmp.lt.s32.totalorder %s17, 1
        %s149 = scalar_select %p148, %s17, 1
        %p150 = scmp.lt.s32.totalorder %s18, 0
        %s151 = scalar_select %p150, %s18, 0
        %s152 = smul.addr %s149, 2
        %s153 = sadd.s32 %s151, %s152
        %s154 = smul.addr %s153, 8
        %s155 = scalar_lea.vmem %s0, %s154
      $region24: #{preconv_forward.2} parent=19 // pred_fallthru
        _
    $region20: #{preconv_forward.2} parent=5 // pred_fallthru
      _
    %p156 = scmp.le.s32.totalorder 1, %s10
    %p157 = scmp.lt.s32.totalorder %s10, 3
    %p158 = pnand %p156, %p157
    %p159 = pneg %p158
    // Predicated region
    $region25: #{preconv_forward.2} parent=5 // pred_check
      _
    $region26: #{preconv_forward.2} parent=5 // pred_check_branch
      %161 = sbr.rel (%p158) target = $region28
    $region27: #{preconv_forward.2} parent=5 // pred_region
      %s162 = ssub.s32 %s10, 1
      %p163 = scmp.lt.s32.totalorder %s19, 1
      %s164 = scalar_select %p163, %s19, 1
      %p165 = scmp.lt.s32.totalorder %s20, 0
      %s166 = scalar_select %p165, %s20, 0
      %s167 = smul.addr %s164, 2
      %s168 = sadd.s32 %s166, %s167
      %s169 = smul.addr %s168, 8
      %s170 = scalar_lea.vmem %s0, %s169
      %p171 = pneg %p50
      %p172 = pneg %p47
      %p173 = pneg %p71
      %p174 = pneg %p68
      %p175 = pneg %p97
      %p176 = pneg %p94
      %p177 = scmp.lt.s32.totalorder %s19, 1
      %s178 = scalar_select %p177, %s19, 1
      %s179 = smul.addr %s178, 8
      %s180 = scalar_lea.vmem %s2, %s179
      %p181 = pneg %p123
      %p182 = pneg %p120
      %p183 = scmp.lt.s32.totalorder %s19, 1
      %s184 = scalar_select %p183, %s19, 1
      %s185 = smul.addr %s184, 8
      %s186 = scalar_lea.vmem %s3, %s185
      %p187 = scmp.lt.s32.totalorder %s19, 1
      %s188 = scalar_select %p187, %s19, 1
      %p189 = scmp.lt.s32.totalorder %s20, 0
      %s190 = scalar_select %p189, %s20, 0
      %s191 = smul.addr %s188, 2
      %s192 = sadd.s32 %s190, %s191
      %s193 = smul.addr %s192, 8
      %s194 = scalar_lea.vmem %s0, %s193
      %p195 = scmp.lt.s32.totalorder %s19, 1
      %s196 = scalar_select %p195, %s19, 1
      %s197 = smul.addr %s196, 8
      %s198 = scalar_lea.vmem %s2, %s197
      %p199 = scmp.lt.s32.totalorder %s19, 1
      %s200 = scalar_select %p199, %s19, 1
      %s201 = smul.addr %s200, 8
      %s202 = scalar_lea.vmem %s3, %s201
      %p203 = scmp.eq.s32.totalorder %s20, 0
      // Predicated region
      $region29: #{preconv_forward.2} parent=27 // pred_check
        %p204 = pneg %p203
      $region30: #{preconv_forward.2} parent=27 // pred_check_branch
        %206 = sbr.rel (%p204) target = $region32
      $region31: #{preconv_forward.2} parent=27 // pred_region
        %vm207 = vcmask 7168
        %208 = vst.msk [vmem:[#allocation2] sm:$0xff] %vm207, 0.0
        %209 = vst.msk [vmem:[#allocation3] sm:$0xff] %vm207, 0.0
      $region32: #{preconv_forward.2} parent=27 // pred_fallthru
        _
      %v210 = vld [vmem:[%s1] sm:$0xff]
      %v211 = vld [vmem:[%s194] sm:$0xff]
      %v212 = vld [vmem:[%s194 + $0x8] sm:$0xff]
      %vm213 = vcmask 130048
      %v215 = vsel %vm213, %v210, 0
      %217 = vmatpush.msra.mxu0 0.0
      %218 = vmatpush.msra.mxu0 0.0
      %219 = vmatpush.msra.mxu0 0.0
      %220 = vmatpush.msra.mxu0 0.0
      %221 = vmatpush.msra.mxu0 0.0
      %222 = vmatpush.msra.mxu0 0.0
      %223 = vmatpush.msra.mxu0 0.0
      %224 = vmatpush.msra.mxu0 0.0
      %225 = vmatpush.msra.mxu0 0.0
      %226 = vmatpush.msra.mxu0 0.0
      %227 = vmatpush.msra.mxu0 0.0
      %228 = vmatpush.msra.mxu0 0.0
      %229 = vmatpush.msra.mxu0 0.0
      %230 = vmatpush.msra.mxu0 0.0
      %231 = vmatpush.msra.mxu0 %v212
      %232 = vmatpush.msra.mxu0 %v211
      %233 = vmatmul.f32.gmra.mxu0 %v215
      %v234 = vpop.f32.mrf.mxu0
      %v235 = vadd.f32 0.0, %v234
      %236 = vdwg.mxu0
      %v237 = vld [vmem:[#allocation2] sm:$0xff]
      %vm238 = vcmask 523264
      %v239 = vsel %vm238, %v235, 0.0
      %240 = vadd.xlane.f32.xlu0 %v239
      %v241 = vpop.xlane.xlu0 %240
      %v242 = vadd.f32 %v237, %v241
      %vm243 = vcmask 7168
      %244 = vst.msk [vmem:[#allocation2] sm:$0xff] %vm243, %v242
      %v245 = vld [vmem:[#allocation3] sm:$0xff]
      %v246 = vmul.f32 %v235, %v235
      %v247 = vsel %vm238, %v246, 0.0
      %248 = vadd.xlane.f32.xlu0 %v247
      %v249 = vpop.xlane.xlu0 %248
      %v250 = vadd.f32 %v245, %v249
      %251 = vst.msk [vmem:[#allocation3] sm:$0xff] %vm243, %v250
      // Predicated region
      $region33: #{preconv_forward.2} parent=27 // pred_check
        %p252 = pneg %p203
      $region34: #{preconv_forward.2} parent=27 // pred_check_branch
        %254 = sbr.rel (%p252) target = $region36
      $region35: #{preconv_forward.2} parent=27 // pred_region
        %v255 = vld [vmem:[#allocation2] sm:$0xff]
        %256 = vst.msk [vmem:[%s198] sm:$0xff] %vm243, %v255
        %v257 = vld [vmem:[#allocation3] sm:$0xff]
        %258 = vst.msk [vmem:[%s202] sm:$0xff] %vm243, %v257
      $region36: #{preconv_forward.2} parent=27 // pred_fallthru
        _
      %p259 = scmp.lt.s32.totalorder %s19, 1
      %s260 = scalar_select %p259, %s19, 1
      %s261 = smul.addr %s260, 8
      %s262 = scalar_lea.vmem %s2, %s261
      %p263 = scmp.lt.s32.totalorder %s19, 1
      %s264 = scalar_select %p263, %s19, 1
      %s265 = smul.addr %s264, 8
      %s266 = scalar_lea.vmem %s3, %s265
      // Predicated region
      $region37: #{preconv_forward.2} parent=27 // pred_check
        %p267 = pneg %p94
      $region38: #{preconv_forward.2} parent=27 // pred_check_branch
        %269 = sbr.rel (%p267) target = $region40
      $region39: #{preconv_forward.2} parent=27 // pred_region
        _
      $region40: #{preconv_forward.2} parent=27 // pred_fallthru
        _
      // Predicated region
      $region41: #{preconv_forward.2} parent=27 // pred_check
        %p270 = pneg %p120
      $region42: #{preconv_forward.2} parent=27 // pred_check_branch
        %272 = sbr.rel (%p270) target = $region44
      $region43: #{preconv_forward.2} parent=27 // pred_region
        _
      $region44: #{preconv_forward.2} parent=27 // pred_fallthru
        _
    $region28: #{preconv_forward.2} parent=5 // pred_fallthru
      _
    %p273 = scmp.le.s32.totalorder 2, %s10
    // Predicated region
    $region45: #{preconv_forward.2} parent=5 // pred_check
      %p274 = pneg %p273
    $region46: #{preconv_forward.2} parent=5 // pred_check_branch
      %276 = sbr.rel (%p274) target = $region48
    $region47: #{preconv_forward.2} parent=5 // pred_region
      %s277 = ssub.s32 %s10, 2
      // Predicated region
      $region49: #{preconv_forward.2} parent=47 // pred_check
        %p278 = pneg %p100
      $region50: #{preconv_forward.2} parent=47 // pred_check_branch
        %280 = sbr.rel (%p278) target = $region52
      $region51: #{preconv_forward.2} parent=47 // pred_region
        %p281 = scmp.lt.s32.totalorder %s21, 1
        %s282 = scalar_select %p281, %s21, 1
        %s283 = smul.addr %s282, 8
        %s284 = scalar_lea.vmem %s2, %s283
      $region52: #{preconv_forward.2} parent=47 // pred_fallthru
        _
      // Predicated region
      $region53: #{preconv_forward.2} parent=47 // pred_check
        %p285 = pneg %p126
      $region54: #{preconv_forward.2} parent=47 // pred_check_branch
        %287 = sbr.rel (%p285) target = $region56
      $region55: #{preconv_forward.2} parent=47 // pred_region
        %p288 = scmp.lt.s32.totalorder %s21, 1
        %s289 = scalar_select %p288, %s21, 1
        %s290 = smul.addr %s289, 8
        %s291 = scalar_lea.vmem %s3, %s290
      $region56: #{preconv_forward.2} parent=47 // pred_fallthru
        _
    $region48: #{preconv_forward.2} parent=5 // pred_fallthru
      _
  $region6: #{preconv_forward.2} parent=0 // loop_footer
    %s14 = sadd.s32 1, %s10
  $region7: #{preconv_forward.2} parent=0 // loop_footer_branch
    %9 = sbr.rel target = $region3
  $region8: #{preconv_forward.2} parent=0 // loop_exit
    _

// kernel: preconv_forward.3
$region0: #{preconv_forward.3}
  #allocation0 [shape = 'u32[]', space=smem, size = 0x4, offset = 0x4, fixed_abs, tag = 'smem constant byte address 0x4 - core index']
  #allocation1 [shape = 'u32[72,128]{1,0:T(1,128)}', space=vmem, size = 0x9000, scoped, tag = 'internal scratch']
  %s0 = inlined_call_operand.vmem [shape: f32[2,16,64], index: 0, kind: input, shape index: {}]
  %s1 = inlined_call_operand.vmem [shape: f32[8,16], index: 1, kind: input, shape index: {}]
  %s2 = inlined_call_operand.vmem [shape: f32[8,1], index: 2, kind: input, shape index: {}]
  %s3 = inlined_call_operand.vmem [shape: f32[2,8,64], index: 3, kind: output, shape index: {}]
  %s4 = sld [smem:[#allocation0]]
  $region45: #{preconv_forward.3} parent=0
    _
  %s6 = ssub.s32 1, %s4
  %s7 = scalar_select 0, %s6, %s4
  loop: start=0, step=1, limit=4
  $region2: #{preconv_forward.3} parent=0 // loop_pre_header
    _
  $region3: #{preconv_forward.3} parent=0 // loop_header
    %s9 = sphi 0, %s13
    %p10 = scmp.ge.s32.totalorder %s9, 4
    %s16 = sphi 0, %s28
    %s17 = sphi 0, %s24
    %s18 = sphi 0, %s16
    %s19 = sphi 0, %s17
    %s20 = sphi 0, %s18
    %s21 = sphi 0, %s19
    %s33 = sphi 0, %s35
    %s36 = sphi 0, %s33
    %s37 = sphi 0, %s36
    %s53 = sphi 0, %s37
    %s57 = sphi 0, %s57
    %s59 = sphi 0, %s57
    %s60 = sphi 0, %s59
    %s74 = sphi 0, %s60
    %s78 = sphi 0, %s78
    %s80 = sphi 0, %s78
    %s81 = sphi 0, %s80
    %s95 = sphi 0, %s81
    %s103 = sphi 0, %s105
    %s106 = sphi 0, %s103
    %s107 = sphi 0, %s106
    %s123 = sphi 0, %s107
  $region4: #{preconv_forward.3} parent=0 // loop_header_branch
    %12 = sbr.rel (%p10) target = $region8
  $region5: #{preconv_forward.3} parent=0 // loop_body
    %s14 = ssub.s32 %s9, 1
    %s15 = ssub.s32 %s9, 2
    %s22 = sadd.s32 1, %s17
    %p23 = scmp.ge.s32.totalorder %s22, 1
    %s24 = scalar_select %p23, 0, %s22
    %s25 = sadd.s32 1, %s16
    %s26 = scalar_select %p23, %s25, %s16
    %p27 = scmp.ge.s32.totalorder %s26, 2
    %s28 = scalar_select %p27, 0, %s26
    %s29 = ssub.s32 %s16, %s28
    %s30 = ssub.s32 %s17, %s24
    %s31 = sor.u32 %s29, %s30
    %p32 = scmp.eq.s32.totalorder %s31, 0
    %s34 = sadd.s32 %s33, 1
    %s35 = scalar_select %p32, %s33, %s34
    %p38 = pneg %p32
    %p39 = scmp.eq.s32.totalorder %s9, 1
    %p40 = por %p38, %p39
    %p41 = scmp.ne.s32.totalorder %s33, %s36
    %p42 = scmp.eq.s32.totalorder %s9, 0
    %p43 = por %p41, %p42
    %p44 = scmp.ne.s32.totalorder %s33, %s36
    %p45 = scmp.eq.s32.totalorder %s14, 1
    %p46 = por %p44, %p45
    %p47 = scmp.ne.s32.totalorder %s36, %s37
    %p48 = scmp.eq.s32.totalorder %s14, 0
    %p49 = por %p47, %p48
    %p50 = scmp.ne.s32.totalorder %s36, %s37
    %p51 = scmp.eq.s32.totalorder %s15, 1
    %p52 = por %p50, %p51
    %p54 = scmp.ne.s32.totalorder %s37, %s53
    %p55 = scmp.eq.s32.totalorder %s15, 0
    %p56 = por %p54, %p55
    %s58 = sadd.s32 %s57, 1
    %p61 = scmp.eq.s32.totalorder %s9, 1
    %p62 = scmp.ne.s32.totalorder %s57, %s59
    %p63 = scmp.eq.s32.totalorder %s9, 0
    %p64 = por %p62, %p63
    %p65 = scmp.ne.s32.totalorder %s57, %s59
    %p66 = scmp.eq.s32.totalorder %s14, 1
    %p67 = por %p65, %p66
    %p68 = scmp.ne.s32.totalorder %s59, %s60
    %p69 = scmp.eq.s32.totalorder %s14, 0
    %p70 = por %p68, %p69
    %p71 = scmp.ne.s32.totalorder %s59, %s60
    %p72 = scmp.eq.s32.totalorder %s15, 1
    %p73 = por %p71, %p72
    %p75 = scmp.ne.s32.totalorder %s60, %s74
    %p76 = scmp.eq.s32.totalorder %s15, 0
    %p77 = por %p75, %p76
    %s79 = sadd.s32 %s78, 1
    %p82 = scmp.eq.s32.totalorder %s9, 1
    %p83 = scmp.ne.s32.totalorder %s78, %s80
    %p84 = scmp.eq.s32.totalorder %s9, 0
    %p85 = por %p83, %p84
    %p86 = scmp.ne.s32.totalorder %s78, %s80
    %p87 = scmp.eq.s32.totalorder %s14, 1
    %p88 = por %p86, %p87
    %p89 = scmp.ne.s32.totalorder %s80, %s81
    %p90 = scmp.eq.s32.totalorder %s14, 0
    %p91 = por %p89, %p90
    %p92 = scmp.ne.s32.totalorder %s80, %s81
    %p93 = scmp.eq.s32.totalorder %s15, 1
    %p94 = por %p92, %p93
    %p96 = scmp.ne.s32.totalorder %s81, %s95
    %p97 = scmp.eq.s32.totalorder %s15, 0
    %p98 = por %p96, %p97
    %s99 = ssub.s32 %s16, %s28
    %s100 = ssub.s32 %s17, %s24
    %s101 = sor.u32 %s99, %s100
    %p102 = scmp.eq.s32.totalorder %s101, 0
    %s104 = sadd.s32 %s103, 1
    %s105 = scalar_select %p102, %s103, %s104
    %p108 = pneg %p102
    %p109 = scmp.eq.s32.totalorder %s9, 1
    %p110 = por %p108, %p109
    %p111 = scmp.ne.s32.totalorder %s103, %s106
    %p112 = scmp.eq.s32.totalorder %s9, 0
    %p113 = por %p111, %p112
    %p114 = scmp.ne.s32.totalorder %s103, %s106
    %p115 = scmp.eq.s32.totalorder %s14, 1
    %p116 = por %p114, %p115
    %p117 = scmp.ne.s32.totalorder %s106, %s107
    %p118 = scmp.eq.s32.totalorder %s14, 0
    %p119 = por %p117, %p118
    %p120 = scmp.ne.s32.totalorder %s106, %s107
    %p121 = scmp.eq.s32.totalorder %s15, 1
    %p122 = por %p120, %p121
    %p124 = scmp.ne.s32.totalorder %s107, %s123
    %p125 = scmp.eq.s32.totalorder %s15, 0
    %p126 = por %p124, %p125
    %p127 = scmp.le.s32.totalorder 1, %s9
    %p128 = scmp.lt.s32.totalorder %s9, 3
    %p129 = pnand %p127, %p128
    %p130 = pneg %p129
    // Predicated region
    $region9: #{preconv_forward.3} parent=5 // pred_check
      _
    $region10: #{preconv_forward.3} parent=5 // pred_check_branch
      %132 = sbr.rel (%p129) target = $region12
    $region11: #{preconv_forward.3} parent=5 // pred_region
      %s133 = ssub.s32 %s9, 1
      // Predicated region
      $region13: #{preconv_forward.3} parent=11 // pred_check
        %p134 = pneg %p70
      $region14: #{preconv_forward.3} parent=11 // pred_check_branch
        %136 = sbr.rel (%p134) target = $region16
      $region15: #{preconv_forward.3} parent=11 // pred_region
        _
      $region16: #{preconv_forward.3} parent=11 // pred_fallthru
        _
      // Predicated region
      $region17: #{preconv_forward.3} parent=11 // pred_check
        %p137 = pneg %p91
      $region18: #{preconv_forward.3} parent=11 // pred_check_branch
        %139 = sbr.rel (%p137) target = $region20
      $region19: #{preconv_forward.3} parent=11 // pred_region
        _
      $region20: #{preconv_forward.3} parent=11 // pred_fallthru
        _
    $region12: #{preconv_forward.3} parent=5 // pred_fallthru
      _
    %p140 = scmp.lt.s32.totalorder %s9, 2
    // Predicated region
    $region21: #{preconv_forward.3} parent=5 // pred_check
      %p141 = pneg %p140
    $region22: #{preconv_forward.3} parent=5 // pred_check_branch
      %143 = sbr.rel (%p141) target = $region24
    $region23: #{preconv_forward.3} parent=5 // pred_region
      // Predicated region
      $region25: #{preconv_forward.3} parent=23 // pred_check
        %p144 = pneg %p43
      $region26: #{preconv_forward.3} parent=23 // pred_check_branch
        %146 = sbr.rel (%p144) target = $region28
      $region27: #{preconv_forward.3} parent=23 // pred_region
        %p147 = scmp.lt.s32.totalorder %s16, 1
        %s148 = scalar_select %p147, %s16, 1
        %p149 = scmp.lt.s32.totalorder %s17, 0
        %s150 = scalar_select %p149, %s17, 0
        %s151 = smul.addr %s148, 2
        %s152 = sadd.s32 %s150, %s151
        %s153 = smul.addr %s152, 8
        %s154 = scalar_lea.vmem %s0, %s153
      $region28: #{preconv_forward.3} parent=23 // pred_fallthru
        _
    $region24: #{preconv_forward.3} parent=5 // pred_fallthru
      _
    %p155 = scmp.le.s32.totalorder 1, %s9
    %p156 = scmp.lt.s32.totalorder %s9, 3
    %p157 = pnand %p155, %p156
    %p158 = pneg %p157
    // Predicated region
    $region29: #{preconv_forward.3} parent=5 // pred_check
      _
    $region30: #{preconv_forward.3} parent=5 // pred_check_branch
      %160 = sbr.rel (%p157) target = $region32
    $region31: #{preconv_forward.3} parent=5 // pred_region
      %s161 = ssub.s32 %s9, 1
      %p162 = scmp.lt.s32.totalorder %s18, 1
      %s163 = scalar_select %p162, %s18, 1
      %p164 = scmp.lt.s32.totalorder %s19, 0
      %s165 = scalar_select %p164, %s19, 0
      %s166 = smul.addr %s163, 2
      %s167 = sadd.s32 %s165, %s166
      %s168 = smul.addr %s167, 8
      %s169 = scalar_lea.vmem %s0, %s168
      %p170 = pneg %p49
      %p171 = pneg %p46
      %p172 = pneg %p70
      %p173 = pneg %p67
      %p174 = pneg %p91
      %p175 = pneg %p88
      %p176 = pneg %p119
      %p177 = pneg %p116
      %p178 = scmp.lt.s32.totalorder %s18, 1
      %s179 = scalar_select %p178, %s18, 1
      %p180 = scmp.lt.s32.totalorder %s19, 0
      %s181 = scalar_select %p180, %s19, 0
      %s182 = sadd.s32 %s181, %s179
      %s183 = smul.addr %s182, 8
      %s184 = scalar_lea.vmem %s3, %s183
      %p185 = scmp.lt.s32.totalorder %s18, 1
      %s186 = scalar_select %p185, %s18, 1
      %p187 = scmp.lt.s32.totalorder %s19, 0
      %s188 = scalar_select %p187, %s19, 0
      %s189 = smul.addr %s186, 2
      %s190 = sadd.s32 %s188, %s189
      %s191 = smul.addr %s190, 8
      %s192 = scalar_lea.vmem %s0, %s191
      %p193 = scmp.lt.s32.totalorder %s18, 1
      %s194 = scalar_select %p193, %s18, 1
      %p195 = scmp.lt.s32.totalorder %s19, 0
      %s196 = scalar_select %p195, %s19, 0
      %s197 = sadd.s32 %s196, %s194
      %s198 = smul.addr %s197, 8
      %s199 = scalar_lea.vmem %s3, %s198
      %v200 = vld [vmem:[%s1] sm:$0xff]
      %v201 = vld [vmem:[%s192] sm:$0xff]
      %v202 = vld [vmem:[%s192 + $0x8] sm:$0xff]
      %v203 = vld [vmem:[%s2] sm:$0xff]
      %205 = vset.pattern.permute.xlu0 0
      %206 = vperm.xlu0 %205, %v203
      %v207 = vpop.permute.xlu0 %206
      %vm209 = vcmask 130048
      %v211 = vsel %vm209, %v200, 0
      %213 = vmatpush.msra.mxu0 0.0
      %214 = vmatpush.msra.mxu0 0.0
      %215 = vmatpush.msra.mxu0 0.0
      %216 = vmatpush.msra.mxu0 0.0
      %217 = vmatpush.msra.mxu0 0.0
      %218 = vmatpush.msra.mxu0 0.0
      %219 = vmatpush.msra.mxu0 0.0
      %220 = vmatpush.msra.mxu0 0.0
      %221 = vmatpush.msra.mxu0 0.0
      %222 = vmatpush.msra.mxu0 0.0
      %223 = vmatpush.msra.mxu0 0.0
      %224 = vmatpush.msra.mxu0 0.0
      %225 = vmatpush.msra.mxu0 0.0
      %226 = vmatpush.msra.mxu0 0.0
      %227 = vmatpush.msra.mxu0 %v202
      %228 = vmatpush.msra.mxu0 %v201
      %229 = vmatmul.f32.gmra.mxu0 %v211
      %v230 = vpop.f32.mrf.mxu0
      %v231 = vadd.f32 %v207, %v230
      %232 = vdwg.mxu0
      %v233 = vmax.f32 %v231, 0.0
      %vm234 = vcmask 523264
      %235 = vst.msk [vmem:[%s199] sm:$0xff] %vm234, %v233
      %p236 = scmp.lt.s32.totalorder %s18, 1
      %s237 = scalar_select %p236, %s18, 1
      %p238 = scmp.lt.s32.totalorder %s19, 0
      %s239 = scalar_select %p238, %s19, 0
      %s240 = sadd.s32 %s239, %s237
      %s241 = smul.addr %s240, 8
      %s242 = scalar_lea.vmem %s3, %s241
      // Predicated region
      $region33: #{preconv_forward.3} parent=31 // pred_check
        %p243 = pneg %p116
      $region34: #{preconv_forward.3} parent=31 // pred_check_branch
        %245 = sbr.rel (%p243) target = $region36
      $region35: #{preconv_forward.3} parent=31 // pred_region
        _
      $region36: #{preconv_forward.3} parent=31 // pred_fallthru
        _
    $region32: #{preconv_forward.3} parent=5 // pred_fallthru
      _
    %p246 = scmp.le.s32.totalorder 2, %s9
    // Predicated region
    $region37: #{preconv_forward.3} parent=5 // pred_check
      %p247 = pneg %p246
    $region38: #{preconv_forward.3} parent=5 // pred_check_branch
      %249 = sbr.rel (%p247) target = $region40
    $region39: #{preconv_forward.3} parent=5 // pred_region
      %s250 = ssub.s32 %s9, 2
      // Predicated region
      $region41: #{preconv_forward.3} parent=39 // pred_check
        %p251 = pneg %p122
      $region42: #{preconv_forward.3} parent=39 // pred_check_branch
        %253 = sbr.rel (%p251) target = $region44
      $region43: #{preconv_forward.3} parent=39 // pred_region
        %p254 = scmp.lt.s32.totalorder %s20, 1
        %s255 = scalar_select %p254, %s20, 1
        %p256 = scmp.lt.s32.totalorder %s21, 0
        %s257 = scalar_select %p256, %s21, 0
        %s258 = sadd.s32 %s257, %s255
        %s259 = smul.addr %s258, 8
        %s260 = scalar_lea.vmem %s3, %s259
      $region44: #{preconv_forward.3} parent=39 // pred_fallthru
        _
    $region40: #{preconv_forward.3} parent=5 // pred_fallthru
      _
  $region6: #{preconv_forward.3} parent=0 // loop_footer
    %s13 = sadd.s32 1, %s9
  $region7: #{preconv_forward.3} parent=0 // loop_footer_branch
    %8 = sbr.rel target = $region3
  $region8: #{preconv_forward.3} parent=0 // loop_exit
    _

</llo_original>
